<compile_context>
chip_gen: v7x
topology: tpu7x:2x2x1
jax: 0.10.0
libtpu: 0.0.40
codegen_flags: <defaults>
</compile_context>

<pallas_src>
import jax
import jax.numpy as jnp
from jax.experimental import pallas as pl
from jax.experimental.pallas import tpu as pltpu

HIDDEN = 256
LANE = 128
TB_TARGET = 512   # target rows per batch tile (step-overhead amortisation)


def _round_up(x, m):
    return (x + m - 1) // m * m


def _sigmoid_eup(z):
    # sigmoid(z) == 0.5*tanh(0.5*z) + 0.5 : one EUP transcendental, no divide.
    return 0.5 * jnp.tanh(0.5 * z) + 0.5


def actor_kernel(x_ref, w1_ref, b1_ref, w2_ref, b2_ref, w3_ref, b3_ref, o_ref):
    """One batch tile of the fused 3-layer MLP.

    All matmuls are bf16 x bf16 on the MXU with f32 accumulation; biases and
    the elementwise epilogue (sigmoid, *12) stay in f32.
    """
    x = x_ref[...].astype(jnp.bfloat16)

    h = jnp.dot(x, w1_ref[...], preferred_element_type=jnp.float32)
    h = _sigmoid_eup(h + b1_ref[...])

    h = jnp.dot(h.astype(jnp.bfloat16), w2_ref[...],
                preferred_element_type=jnp.float32)
    h = _sigmoid_eup(h + b2_ref[...])

    h = jnp.dot(h.astype(jnp.bfloat16), w3_ref[...],
                preferred_element_type=jnp.float32)
    h = _sigmoid_eup(h + b3_ref[...])

    o_ref[...] = (h * 12.0).astype(o_ref.dtype)


def prepare_params(params):
    """Cast weights to bf16 and pad layer-3 to a lane-dense 128-wide output slab.

    Do this once and reuse the result across forward calls (e.g. every RL step)
    so the cast/pad cost is not paid per call.
    """
    A = params["w3"].shape[1]
    A_pad = _round_up(max(A, LANE), LANE)
    H = params["w1"].shape[1]

    w3 = jnp.zeros((H, A_pad), jnp.bfloat16).at[:, :A].set(
        params["w3"].astype(jnp.bfloat16))
    b3 = jnp.zeros((1, A_pad), jnp.float32).at[:, :A].set(
        params["b3"].astype(jnp.float32))

    return {
        "w1": params["w1"].astype(jnp.bfloat16),
        "b1": params["b1"].astype(jnp.float32),
        "w2": params["w2"].astype(jnp.bfloat16),
        "b2": params["b2"].astype(jnp.float32),
        "w3": w3,
        "b3": b3,
        "action_dim": A,
    }


def _pick_tile(B):
    """Batch tile size: minimise padding, target ~TB_TARGET rows, and keep
    >=2 grid steps when B>8 so both v7x TensorCores are used."""
    if B <= 8:
        return _round_up(max(B, 1), 8)
    n_tiles = max(2, pl.cdiv(B, TB_TARGET))
    return _round_up(pl.cdiv(B, n_tiles), 8)


def actor_forward(state, prepped):
    """Fused 3-layer MLP forward, batch-tiled, weights resident in VMEM."""
    B, S = state.shape
    H = prepped["w1"].shape[1]
    A_pad = prepped["w3"].shape[1]
    A = prepped["action_dim"]

    TB = _pick_tile(B)
    B_pad = _round_up(B, TB)

    x = state.astype(jnp.float32)
    if B_pad != B:
        # TODO(synk): for large B, fusing this pad (and the output slice below)
        # into the producer/consumer would avoid two extra HBM round trips.
        x = jnp.zeros((B_pad, S), jnp.float32).at[:B].set(x)

    grid = (B_pad // TB,)

    out = pl.pallas_call(
        actor_kernel,
        out_shape=jax.ShapeDtypeStruct((B_pad, A_pad), jnp.float32),
        grid=grid,
        in_specs=[
            # Activations: tiled along batch -> software-pipelined DMA per step.
            pl.BlockSpec((TB, S), lambda i: (i, 0)),
            # Weights / biases: constant block index -> stay resident in VMEM
            # across all grid steps (no re-DMA).
            pl.BlockSpec((S, H), lambda i: (0, 0)),
            pl.BlockSpec((1, H), lambda i: (0, 0)),
            pl.BlockSpec((H, H), lambda i: (0, 0)),
            pl.BlockSpec((1, H), lambda i: (0, 0)),
            pl.BlockSpec((H, A_pad), lambda i: (0, 0)),
            pl.BlockSpec((1, A_pad), lambda i: (0, 0)),
        ],
        out_specs=pl.BlockSpec((TB, A_pad), lambda i: (i, 0)),
        compiler_params=pltpu.CompilerParams(
            # Batch tiles are independent -> shard across both TCs on v7x.
            dimension_semantics=("parallel",),
        ),
    )(x, prepped["w1"], prepped["b1"], prepped["w2"], prepped["b2"],
      prepped["w3"], prepped["b3"])

    # Slice off batch padding and the lane padding of the final layer.
    return out[:B, :A]


def init_params(key, state_dim, action_dim, hidden=HIDDEN):
    """Deterministic synthetic parameter init (PyTorch-like uniform fan-in)."""
    ks = jax.random.split(key, 6)

    def uniform(k, shape, fan_in):
        bound = 1.0 / jnp.sqrt(fan_in)
        return jax.random.uniform(k, shape, jnp.float32, -bound, bound)

    return {
        "w1": uniform(ks[0], (state_dim, hidden), state_dim),
        "b1": uniform(ks[1], (1, hidden), state_dim),
        "w2": uniform(ks[2], (hidden, hidden), hidden),
        "b2": uniform(ks[3], (1, hidden), hidden),
        "w3": uniform(ks[4], (hidden, action_dim), hidden),
        "b3": uniform(ks[5], (1, action_dim), hidden),
    }


def actor_reference_f32(state, params):
    """Pure-JAX reference, full f32 (original module semantics)."""
    x = jax.nn.sigmoid(state @ params["w1"] + params["b1"])
    x = jax.nn.sigmoid(x @ params["w2"] + params["b2"])
    x = jax.nn.sigmoid(x @ params["w3"] + params["b3"])
    return x * 12.0


def actor_reference_bf16(state, params):
    """Pure-JAX reference mirroring the kernel's bf16 weight + bf16 dot-input
    rounding (f32 accumulation, f32 elementwise epilogue)."""
    bf = jnp.bfloat16
    w1, w2, w3 = (params["w1"].astype(bf), params["w2"].astype(bf),
                  params["w3"].astype(bf))
    x = state.astype(jnp.float32).astype(bf)
    h = jnp.dot(x, w1, preferred_element_type=jnp.float32)
    h = jax.nn.sigmoid(h + params["b1"])
    h = jnp.dot(h.astype(bf), w2, preferred_element_type=jnp.float32)
    h = jax.nn.sigmoid(h + params["b2"])
    h = jnp.dot(h.astype(bf), w3, preferred_element_type=jnp.float32)
    h = jax.nn.sigmoid(h + params["b3"])
    return h * 12.0


if __name__ == "__main__":
    key = jax.random.PRNGKey(0)
    k_params, k_state, k_state2 = jax.random.split(key, 3)

    state_dim, action_dim, batch = 32, 8, 8
    params = init_params(k_params, state_dim, action_dim)
    prepped = prepare_params(params)

    # --- small batch (single tile) ---
    state = jax.random.normal(k_state, (batch, state_dim), jnp.float32)
    out = jax.block_until_ready(actor_forward(state, prepped))
    assert out.shape == (batch, action_dim)

    ref_bf16 = actor_reference_bf16(state, params)
    assert jnp.allclose(out, ref_bf16, atol=2e-3, rtol=2e-3), \
        float(jnp.max(jnp.abs(out - ref_bf16)))
    ref_f32 = actor_reference_f32(state, params)
    assert jnp.allclose(out, ref_f32, atol=6e-2, rtol=6e-2), \
        float(jnp.max(jnp.abs(out - ref_f32)))

    # --- larger batch (exercises multi-tile grid; 400 -> two 200-row tiles,
    #     zero padded rows) ---
    big_batch = 400
    state_big = jax.random.normal(k_state2, (big_batch, state_dim), jnp.float32)
    out_big = jax.block_until_ready(actor_forward(state_big, prepped))
    assert out_big.shape == (big_batch, action_dim)

    ref_big = actor_reference_bf16(state_big, params)
    assert jnp.allclose(out_big, ref_big, atol=2e-3, rtol=2e-3), \
        float(jnp.max(jnp.abs(out_big - ref_big)))
    ref_big_f32 = actor_reference_f32(state_big, params)
    assert jnp.allclose(out_big, ref_big_f32, atol=6e-2, rtol=6e-2), \
        float(jnp.max(jnp.abs(out_big - ref_big_f32)))

    print("KERNEL_OK")
</pallas_src>

<mosaic_0001>
module attributes {stable_mosaic.version = 11 : i64} {
  func.func @actor_kernel(%arg0: i32, %arg1: memref<8x32xf32, #tpu.memory_space<vmem>>, %arg2: memref<32x256xbf16, #tpu.memory_space<vmem>>, %arg3: memref<1x256xf32, #tpu.memory_space<vmem>>, %arg4: memref<256x256xbf16, #tpu.memory_space<vmem>>, %arg5: memref<1x256xf32, #tpu.memory_space<vmem>>, %arg6: memref<256x128xbf16, #tpu.memory_space<vmem>>, %arg7: memref<1x128xf32, #tpu.memory_space<vmem>>, %arg8: memref<8x128xf32, #tpu.memory_space<vmem>>) attributes {dimension_semantics = [#tpu.dimension_semantics<parallel>], iteration_bounds = array<i64: 1>, scalar_prefetch = 0 : i64, scratch_operands = 0 : i64, tpu.core_type = #tpu.core_type<tc>, window_params = [{transform_indices = @transform_0, window_bounds = array<i64: 8, 32>}, {pipeline_mode = #tpu.pipeline_mode<synchronous>, transform_indices = @transform_1, window_bounds = array<i64: 32, 256>}, {pipeline_mode = #tpu.pipeline_mode<synchronous>, transform_indices = @transform_2, window_bounds = array<i64: 1, 256>}, {pipeline_mode = #tpu.pipeline_mode<synchronous>, transform_indices = @transform_3, window_bounds = array<i64: 256, 256>}, {pipeline_mode = #tpu.pipeline_mode<synchronous>, transform_indices = @transform_4, window_bounds = array<i64: 1, 256>}, {pipeline_mode = #tpu.pipeline_mode<synchronous>, transform_indices = @transform_5, window_bounds = array<i64: 256, 128>}, {pipeline_mode = #tpu.pipeline_mode<synchronous>, transform_indices = @transform_6, window_bounds = array<i64: 1, 128>}, {transform_indices = @transform_7, window_bounds = array<i64: 8, 128>}]} {
    %c0 = arith.constant 0 : index
    %c0_0 = arith.constant 0 : index
    %0 = vector.load %arg1[%c0, %c0_0] : memref<8x32xf32, #tpu.memory_space<vmem>>, vector<8x32xf32>
    %1 = arith.truncf %0 : vector<8x32xf32> to vector<8x32xbf16>
    %c0_1 = arith.constant 0 : index
    %c0_2 = arith.constant 0 : index
    %2 = vector.load %arg2[%c0_1, %c0_2] : memref<32x256xbf16, #tpu.memory_space<vmem>>, vector<32x256xbf16>
    %cst = arith.constant dense<0.000000e+00> : vector<8x256xf32>
    %3 = tpu.matmul %1, %2, %cst {dimension_numbers = #tpu.dot_dimension_numbers<[1], [0], [0], [1], [0, 0, 1, 1], [], []>} : vector<8x32xbf16>, vector<32x256xbf16>, vector<8x256xf32> -> vector<8x256xf32>
    %c0_3 = arith.constant 0 : index
    %c0_4 = arith.constant 0 : index
    %4 = vector.load %arg3[%c0_3, %c0_4] : memref<1x256xf32, #tpu.memory_space<vmem>>, vector<1x256xf32>
    %5 = vector.broadcast %4 : vector<1x256xf32> to vector<8x256xf32>
    %6 = arith.addf %3, %5 : vector<8x256xf32>
    %cst_5 = arith.constant 5.000000e-01 : f32
    %7 = vector.broadcast %cst_5 : f32 to vector<8x256xf32>
    %8 = arith.mulf %7, %6 : vector<8x256xf32>
    %9 = math.tanh %8 : vector<8x256xf32>
    %cst_6 = arith.constant 5.000000e-01 : f32
    %10 = vector.broadcast %cst_6 : f32 to vector<8x256xf32>
    %11 = arith.mulf %10, %9 : vector<8x256xf32>
    %cst_7 = arith.constant 5.000000e-01 : f32
    %12 = vector.broadcast %cst_7 : f32 to vector<8x256xf32>
    %13 = arith.addf %11, %12 : vector<8x256xf32>
    %14 = arith.truncf %13 : vector<8x256xf32> to vector<8x256xbf16>
    %c0_8 = arith.constant 0 : index
    %c0_9 = arith.constant 0 : index
    %15 = vector.load %arg4[%c0_8, %c0_9] : memref<256x256xbf16, #tpu.memory_space<vmem>>, vector<256x256xbf16>
    %cst_10 = arith.constant dense<0.000000e+00> : vector<8x256xf32>
    %16 = tpu.matmul %14, %15, %cst_10 {dimension_numbers = #tpu.dot_dimension_numbers<[1], [0], [0], [1], [0, 0, 1, 1], [], []>} : vector<8x256xbf16>, vector<256x256xbf16>, vector<8x256xf32> -> vector<8x256xf32>
    %c0_11 = arith.constant 0 : index
    %c0_12 = arith.constant 0 : index
    %17 = vector.load %arg5[%c0_11, %c0_12] : memref<1x256xf32, #tpu.memory_space<vmem>>, vector<1x256xf32>
    %18 = vector.broadcast %17 : vector<1x256xf32> to vector<8x256xf32>
    %19 = arith.addf %16, %18 : vector<8x256xf32>
    %cst_13 = arith.constant 5.000000e-01 : f32
    %20 = vector.broadcast %cst_13 : f32 to vector<8x256xf32>
    %21 = arith.mulf %20, %19 : vector<8x256xf32>
    %22 = math.tanh %21 : vector<8x256xf32>
    %cst_14 = arith.constant 5.000000e-01 : f32
    %23 = vector.broadcast %cst_14 : f32 to vector<8x256xf32>
    %24 = arith.mulf %23, %22 : vector<8x256xf32>
    %cst_15 = arith.constant 5.000000e-01 : f32
    %25 = vector.broadcast %cst_15 : f32 to vector<8x256xf32>
    %26 = arith.addf %24, %25 : vector<8x256xf32>
    %27 = arith.truncf %26 : vector<8x256xf32> to vector<8x256xbf16>
    %c0_16 = arith.constant 0 : index
    %c0_17 = arith.constant 0 : index
    %28 = vector.load %arg6[%c0_16, %c0_17] : memref<256x128xbf16, #tpu.memory_space<vmem>>, vector<256x128xbf16>
    %cst_18 = arith.constant dense<0.000000e+00> : vector<8x128xf32>
    %29 = tpu.matmul %27, %28, %cst_18 {dimension_numbers = #tpu.dot_dimension_numbers<[1], [0], [0], [1], [0, 0, 1, 1], [], []>} : vector<8x256xbf16>, vector<256x128xbf16>, vector<8x128xf32> -> vector<8x128xf32>
    %c0_19 = arith.constant 0 : index
    %c0_20 = arith.constant 0 : index
    %30 = vector.load %arg7[%c0_19, %c0_20] : memref<1x128xf32, #tpu.memory_space<vmem>>, vector<1x128xf32>
    %31 = vector.broadcast %30 : vector<1x128xf32> to vector<8x128xf32>
    %32 = arith.addf %29, %31 : vector<8x128xf32>
    %cst_21 = arith.constant 5.000000e-01 : f32
    %33 = vector.broadcast %cst_21 : f32 to vector<8x128xf32>
    %34 = arith.mulf %33, %32 : vector<8x128xf32>
    %35 = math.tanh %34 : vector<8x128xf32>
    %cst_22 = arith.constant 5.000000e-01 : f32
    %36 = vector.broadcast %cst_22 : f32 to vector<8x128xf32>
    %37 = arith.mulf %36, %35 : vector<8x128xf32>
    %cst_23 = arith.constant 5.000000e-01 : f32
    %38 = vector.broadcast %cst_23 : f32 to vector<8x128xf32>
    %39 = arith.addf %37, %38 : vector<8x128xf32>
    %cst_24 = arith.constant 1.200000e+01 : f32
    %40 = vector.broadcast %cst_24 : f32 to vector<8x128xf32>
    %41 = arith.mulf %39, %40 : vector<8x128xf32>
    %c0_25 = arith.constant 0 : index
    %c0_26 = arith.constant 0 : index
    %42 = vector.load %arg8[%c0_25, %c0_26] : memref<8x128xf32, #tpu.memory_space<vmem>>, vector<8x128xf32>
    tpu.vector_store %arg8[%c0_25, %c0_26], %41 {strides = array<i32>} : memref<8x128xf32, #tpu.memory_space<vmem>>, vector<8x128xf32>,
    return
  }
  func.func @transform_0(%arg0: i32) -> (i32, i32) {
    %c0_i32 = arith.constant 0 : i32
    %c0_i32_0 = arith.constant 0 : i32
    return %arg0, %c0_i32 : i32, i32
  }
  func.func @transform_1(%arg0: i32) -> (i32, i32) {
    %c0_i32 = arith.constant 0 : i32
    %c0_i32_0 = arith.constant 0 : i32
    %c0_i32_1 = arith.constant 0 : i32
    return %c0_i32, %c0_i32_0 : i32, i32
  }
  func.func @transform_2(%arg0: i32) -> (i32, i32) {
    %c0_i32 = arith.constant 0 : i32
    %c0_i32_0 = arith.constant 0 : i32
    %c0_i32_1 = arith.constant 0 : i32
    return %c0_i32, %c0_i32_0 : i32, i32
  }
  func.func @transform_3(%arg0: i32) -> (i32, i32) {
    %c0_i32 = arith.constant 0 : i32
    %c0_i32_0 = arith.constant 0 : i32
    %c0_i32_1 = arith.constant 0 : i32
    return %c0_i32, %c0_i32_0 : i32, i32
  }
  func.func @transform_4(%arg0: i32) -> (i32, i32) {
    %c0_i32 = arith.constant 0 : i32
    %c0_i32_0 = arith.constant 0 : i32
    %c0_i32_1 = arith.constant 0 : i32
    return %c0_i32, %c0_i32_0 : i32, i32
  }
  func.func @transform_5(%arg0: i32) -> (i32, i32) {
    %c0_i32 = arith.constant 0 : i32
    %c0_i32_0 = arith.constant 0 : i32
    %c0_i32_1 = arith.constant 0 : i32
    return %c0_i32, %c0_i32_0 : i32, i32
  }
  func.func @transform_6(%arg0: i32) -> (i32, i32) {
    %c0_i32 = arith.constant 0 : i32
    %c0_i32_0 = arith.constant 0 : i32
    %c0_i32_1 = arith.constant 0 : i32
    return %c0_i32, %c0_i32_0 : i32, i32
  }
  func.func @transform_7(%arg0: i32) -> (i32, i32) {
    %c0_i32 = arith.constant 0 : i32
    %c0_i32_0 = arith.constant 0 : i32
    return %arg0, %c0_i32 : i32, i32
  }
}

</mosaic_0001>

<llo_original>
// kernel: tpu_custom_call.1
$region0: #{tpu_custom_call.1}
  #allocation0 [shape = 'u32[]', space=smem, size = 0x4, offset = 0x4, fixed_abs, tag = 'smem constant byte address 0x4 - core index']
  #allocation1 [shape = 'u32[144,128]{1,0:T(1,128)}', space=vmem, size = 0x12000, scoped, tag = 'internal scratch']
  %s0 = inlined_call_operand.hbm [shape: f32[8,32], index: 0, kind: input, shape index: {}]
  %s1 = inlined_call_operand.hbm [shape: bf16[32,256], index: 1, kind: input, shape index: {}]
  %s2 = inlined_call_operand.vmem [shape: f32[1,256], index: 2, kind: input, shape index: {}]
  %s3 = inlined_call_operand.hbm [shape: bf16[256,256], index: 3, kind: input, shape index: {}]
  %s4 = inlined_call_operand.vmem [shape: f32[1,256], index: 4, kind: input, shape index: {}]
  %s5 = inlined_call_operand.hbm [shape: bf16[256,128], index: 5, kind: input, shape index: {}]
  %s6 = inlined_call_operand.vmem [shape: f32[1,128], index: 6, kind: input, shape index: {}]
  %s7 = inlined_call_operand.hbm [shape: f32[8,128], index: 7, kind: output, shape index: {}]
  %s8 = sld [smem:[#allocation0]]
  $region54: #{tpu_custom_call.1} parent=0
    _
  %s10 = ssub.s32 1, %s8
  %s11 = scalar_select 0, %s10, %s8
  $region1: #{tpu_custom_call.1} parent=0
    #allocation2 [shape = 'u8[4096]{0}', space=vmem, size = 0x1000, scoped, tag = 'input window, operand 0, single buffered']
    #allocation3 [shape = 's32[1]{0}', space=sflag, size = 0x4, scoped, tag = 'scoped memory for tpu_custom_call.1']
    #allocation4 [shape = 's32[1]{0}', space=sflag, size = 0x4, scoped, tag = 'scoped memory for tpu_custom_call.1']
    #allocation5 [shape = 'u8[16384]{0}', space=vmem, size = 0x4000, scoped, tag = 'input window, operand 1, single buffered']
    #allocation6 [shape = 's32[1]{0}', space=sflag, size = 0x4, scoped, tag = 'scoped memory for tpu_custom_call.1']
    #allocation7 [shape = 'u8[131072]{0}', space=vmem, size = 0x20000, scoped, tag = 'input window, operand 3, single buffered']
    #allocation8 [shape = 'u8[65536]{0}', space=vmem, size = 0x10000, scoped, tag = 'input window, operand 5, single buffered']
    #allocation9 [shape = 's32[1]{0}', space=sflag, size = 0x4, scoped, tag = 'scoped memory for tpu_custom_call.1']
    #allocation10 [shape = 'u8[4096]{0}', space=vmem, size = 0x1000, scoped, tag = 'output window, operand 0, single buffered']
    %12 = vsyncpa [#allocation3], 0
    %13 = vsyncpa [#allocation6], 0
    %14 = vsyncpa [#allocation9], 0
    %15 = vsyncpa [#allocation4], 0
    // Predicated region
    $region2: #{tpu_custom_call.1} parent=1 // pred_check
      _
    $region3: #{tpu_custom_call.1} parent=1 // pred_check_branch
      %17 = sbr.rel (0) target = $region5
    $region4: #{tpu_custom_call.1} parent=1 // pred_region
      %s19 = ssub.s32 128, 128
      %20 = vsyncadd [#allocation3], %s19
      %s22 = sshll.u32 [#allocation2], 4
      %s23 = int_to_ptr.vmem [resolvable:$true] %s22
      %25 = dma.hbm_to_vmem [thread:$0]  %s0, 128, %s23, [#allocation3]
    $region5: #{tpu_custom_call.1} parent=1 // pred_fallthru
      _
    // Predicated region
    $region6: #{tpu_custom_call.1} parent=1 // pred_check
      _
    $region7: #{tpu_custom_call.1} parent=1 // pred_check_branch
      %27 = sbr.rel (0) target = $region9
    $region8: #{tpu_custom_call.1} parent=1 // pred_region
      %s29 = ssub.s32 512, 512
      %30 = vsyncadd [#allocation6], %s29
      %s31 = sshll.u32 [#allocation5], 4
      %s32 = int_to_ptr.vmem [resolvable:$true] %s31
      %37 = dma.hbm_to_vmem [thread:$0]  %s1, 512, %s32, [#allocation6], 128, 128, 8
    $region9: #{tpu_custom_call.1} parent=1 // pred_fallthru
      _
    // Predicated region
    $region10: #{tpu_custom_call.1} parent=1 // pred_check
      _
    $region11: #{tpu_custom_call.1} parent=1 // pred_check_branch
      %39 = sbr.rel (0) target = $region13
    $region12: #{tpu_custom_call.1} parent=1 // pred_region
      _
    $region13: #{tpu_custom_call.1} parent=1 // pred_fallthru
      _
    // Predicated region
    $region14: #{tpu_custom_call.1} parent=1 // pred_check
      _
    $region15: #{tpu_custom_call.1} parent=1 // pred_check_branch
      %41 = sbr.rel (0) target = $region17
    $region16: #{tpu_custom_call.1} parent=1 // pred_region
      %s43 = ssub.s32 4096, 4096
      %44 = vsyncadd [#allocation6], %s43
      %s45 = sshll.u32 [#allocation7], 4
      %s46 = int_to_ptr.vmem [resolvable:$true] %s45
      %51 = dma.hbm_to_vmem [thread:$0]  %s3, 4096, %s46, [#allocation6], 128, 128, 8
    $region17: #{tpu_custom_call.1} parent=1 // pred_fallthru
      _
    // Predicated region
    $region18: #{tpu_custom_call.1} parent=1 // pred_check
      _
    $region19: #{tpu_custom_call.1} parent=1 // pred_check_branch
      %53 = sbr.rel (0) target = $region21
    $region20: #{tpu_custom_call.1} parent=1 // pred_region
      _
    $region21: #{tpu_custom_call.1} parent=1 // pred_fallthru
      _
    // Predicated region
    $region22: #{tpu_custom_call.1} parent=1 // pred_check
      _
    $region23: #{tpu_custom_call.1} parent=1 // pred_check_branch
      %55 = sbr.rel (0) target = $region25
    $region24: #{tpu_custom_call.1} parent=1 // pred_region
      %s57 = ssub.s32 2048, 2048
      %58 = vsyncadd [#allocation9], %s57
      %s59 = sshll.u32 [#allocation8], 4
      %s60 = int_to_ptr.vmem [resolvable:$true] %s59
      %65 = dma.hbm_to_vmem [thread:$0]  %s5, 2048, %s60, [#allocation9], 64, 64, 4
    $region25: #{tpu_custom_call.1} parent=1 // pred_fallthru
      _
    // Predicated region
    $region26: #{tpu_custom_call.1} parent=1 // pred_check
      _
    $region27: #{tpu_custom_call.1} parent=1 // pred_check_branch
      %67 = sbr.rel (0) target = $region29
    $region28: #{tpu_custom_call.1} parent=1 // pred_region
      _
    $region29: #{tpu_custom_call.1} parent=1 // pred_fallthru
      _
    // Predicated region
    $region30: #{tpu_custom_call.1} parent=1 // pred_check
      _
    $region31: #{tpu_custom_call.1} parent=1 // pred_check_branch
      %69 = sbr.rel (0) target = $region33
    $region32: #{tpu_custom_call.1} parent=1 // pred_region
      %70 = dma.done [#allocation3], 128
    $region33: #{tpu_custom_call.1} parent=1 // pred_fallthru
      _
    // Predicated region
    $region34: #{tpu_custom_call.1} parent=1 // pred_check
      _
    $region35: #{tpu_custom_call.1} parent=1 // pred_check_branch
      %72 = sbr.rel (0) target = $region37
    $region36: #{tpu_custom_call.1} parent=1 // pred_region
      %73 = dma.done [#allocation6], 512
    $region37: #{tpu_custom_call.1} parent=1 // pred_fallthru
      _
    // Predicated region
    $region38: #{tpu_custom_call.1} parent=1 // pred_check
      _
    $region39: #{tpu_custom_call.1} parent=1 // pred_check_branch
      %75 = sbr.rel (0) target = $region41
    $region40: #{tpu_custom_call.1} parent=1 // pred_region
      %76 = dma.done [#allocation6], 4096
    $region41: #{tpu_custom_call.1} parent=1 // pred_fallthru
      _
    // Predicated region
    $region42: #{tpu_custom_call.1} parent=1 // pred_check
      _
    $region43: #{tpu_custom_call.1} parent=1 // pred_check_branch
      %78 = sbr.rel (0) target = $region45
    $region44: #{tpu_custom_call.1} parent=1 // pred_region
      %79 = dma.done [#allocation9], 2048
    $region45: #{tpu_custom_call.1} parent=1 // pred_fallthru
      _
    %v81 = vld [vmem:[#allocation2] sm:$0xff]
    %v82 = vpack.c.bf16 %v81, %v81
    %v83 = vld [vmem:[#allocation5] sm:$0xff]
    %v84 = vld [vmem:[#allocation5 + $0x8] sm:$0xff]
    %v85 = vld [vmem:[#allocation5 + $0x10] sm:$0xff]
    %v86 = vld [vmem:[#allocation5 + $0x18] sm:$0xff]
    %v87 = vld [vmem:[%s2] sm:$0x3]
    %v89 = vlaneseq
    %v90 = vshrl.u32 %v89, 7
    %v91 = vsub.s32 0, %v90
    %v92 = vrot.slane %v87, %v91
    %v93 = vlaneseq
    %v94 = vshrl.u32 %v93, 7
    %v95 = vsub.s32 1, %v94
    %v96 = vrot.slane %v87, %v95
    %v103 = vunpack.c.l.b16 %v83
    %v104 = vunpack.c.h.b16 %v83
    %v105 = vunpack.c.l.b16 %v84
    %v106 = vunpack.c.h.b16 %v84
    %v107 = vunpack.c.l.b16 %v85
    %v108 = vunpack.c.h.b16 %v85
    %v109 = vunpack.c.l.b16 %v86
    %v110 = vunpack.c.h.b16 %v86
    %v111 = vpack.c.b16 %v105, %v103
    %v112 = vpack.c.b16 %v106, %v104
    %v113 = vpack.c.b16 %v109, %v107
    %v114 = vpack.c.b16 %v110, %v108
    %vm119 = vcmask 261120
    %v121 = vsel %vm119, %v82, 0
    %123 = vmatprep.subr.bf16.mxu0 %v112
    %124 = vmatpush1.bf16.msra.mxu0 %v111
    %125 = vmatprep.subr.bf16.mxu0 %v114
    %126 = vmatpush1.bf16.msra.mxu0 %v113
    %127 = vmatprep.subr.bf16.mxu0 0
    %128 = vmatpush1.bf16.msra.mxu0 0
    %129 = vmatprep.subr.bf16.mxu0 0
    %130 = vmatpush1.bf16.msra.mxu0 0
    %131 = vmatprep.subr.bf16.mxu0 0
    %132 = vmatpush1.bf16.msra.mxu0 0
    %133 = vmatprep.subr.bf16.mxu0 0
    %134 = vmatpush1.bf16.msra.mxu0 0
    %135 = vmatprep.subr.bf16.mxu0 0
    %136 = vmatpush1.bf16.msra.mxu0 0
    %137 = vmatprep.subr.bf16.mxu0 0
    %138 = vmatpush1.bf16.msra.mxu0 0
    %139 = vmatprep.subr.bf16.mxu0 0
    %140 = vmatpush1.bf16.msra.mxu0 0
    %141 = vmatprep.subr.bf16.mxu0 0
    %142 = vmatpush1.bf16.msra.mxu0 0
    %143 = vmatprep.subr.bf16.mxu0 0
    %144 = vmatpush1.bf16.msra.mxu0 0
    %145 = vmatprep.subr.bf16.mxu0 0
    %146 = vmatpush1.bf16.msra.mxu0 0
    %147 = vmatprep.subr.bf16.mxu0 0
    %148 = vmatpush1.bf16.msra.mxu0 0
    %149 = vmatprep.subr.bf16.mxu0 0
    %150 = vmatpush1.bf16.msra.mxu0 0
    %151 = vmatprep.subr.bf16.mxu0 0
    %152 = vmatpush1.bf16.msra.mxu0 0
    %153 = vmatprep.subr.bf16.mxu0 0
    %154 = vmatpush1.bf16.msra.mxu0 0
    %155 = vmatprep.mubr.bf16.mxu0 0
    %156 = vmatmul.mubr.bf16.gmra.mrb[0].mxu0 %v121
    %v157 = vpop.f32.mrb[0].mxu0
    %v158 = vadd.f32 %v92, %v157
    %v159 = vpop.f32.mrb[0].mxu0
    %v160 = vadd.f32 %v96, %v159
    %v161 = vpop.f32.mrb[0].mxu0
    %v162 = vpop.f32.mrb[0].mxu0
    %163 = vdwg.mxu0
    %v164 = vmul.f32 %v158, 0.5
    %v165 = vmul.f32 %v160, 0.5
    %v166 = vtanh.pop %v164
    %v167 = vtanh.pop %v165
    %v168 = vmul.f32 %v166, 0.5
    %v169 = vmul.f32 %v167, 0.5
    %v170 = vadd.f32 %v168, 0.5
    %v171 = vadd.f32 %v169, 0.5
    %v172 = vpack.c.bf16 %v170, %v170
    %v173 = vpack.c.bf16 %v171, %v171
    %v174 = vld [vmem:[#allocation7] sm:$0xff]
    %v175 = vld [vmem:[#allocation7 + $0x8] sm:$0xff]
    %v176 = vld [vmem:[#allocation7 + $0x10] sm:$0xff]
    %v177 = vld [vmem:[#allocation7 + $0x18] sm:$0xff]
    %v178 = vld [vmem:[#allocation7 + $0x20] sm:$0xff]
    %v179 = vld [vmem:[#allocation7 + $0x28] sm:$0xff]
    %v180 = vld [vmem:[#allocation7 + $0x30] sm:$0xff]
    %v181 = vld [vmem:[#allocation7 + $0x38] sm:$0xff]
    %v182 = vld [vmem:[#allocation7 + $0x40] sm:$0xff]
    %v183 = vld [vmem:[#allocation7 + $0x48] sm:$0xff]
    %v184 = vld [vmem:[#allocation7 + $0x50] sm:$0xff]
    %v185 = vld [vmem:[#allocation7 + $0x58] sm:$0xff]
    %v186 = vld [vmem:[#allocation7 + $0x60] sm:$0xff]
    %v187 = vld [vmem:[#allocation7 + $0x68] sm:$0xff]
    %v188 = vld [vmem:[#allocation7 + $0x70] sm:$0xff]
    %v189 = vld [vmem:[#allocation7 + $0x78] sm:$0xff]
    %v190 = vld [vmem:[#allocation7 + $0x80] sm:$0xff]
    %v191 = vld [vmem:[#allocation7 + $0x88] sm:$0xff]
    %v192 = vld [vmem:[#allocation7 + $0x90] sm:$0xff]
    %v193 = vld [vmem:[#allocation7 + $0x98] sm:$0xff]
    %v194 = vld [vmem:[#allocation7 + $0xa0] sm:$0xff]
    %v195 = vld [vmem:[#allocation7 + $0xa8] sm:$0xff]
    %v196 = vld [vmem:[#allocation7 + $0xb0] sm:$0xff]
    %v197 = vld [vmem:[#allocation7 + $0xb8] sm:$0xff]
    %v198 = vld [vmem:[#allocation7 + $0xc0] sm:$0xff]
    %v199 = vld [vmem:[#allocation7 + $0xc8] sm:$0xff]
    %v200 = vld [vmem:[#allocation7 + $0xd0] sm:$0xff]
    %v201 = vld [vmem:[#allocation7 + $0xd8] sm:$0xff]
    %v202 = vld [vmem:[#allocation7 + $0xe0] sm:$0xff]
    %v203 = vld [vmem:[#allocation7 + $0xe8] sm:$0xff]
    %v204 = vld [vmem:[#allocation7 + $0xf0] sm:$0xff]
    %v205 = vld [vmem:[#allocation7 + $0xf8] sm:$0xff]
    %v206 = vld [vmem:[%s4] sm:$0x3]
    %v208 = vlaneseq
    %v209 = vshrl.u32 %v208, 7
    %v210 = vsub.s32 0, %v209
    %v211 = vrot.slane %v206, %v210
    %v212 = vlaneseq
    %v213 = vshrl.u32 %v212, 7
    %v214 = vsub.s32 1, %v213
    %v215 = vrot.slane %v206, %v214
    %v250 = vunpack.c.l.b16 %v174
    %v251 = vunpack.c.h.b16 %v174
    %v252 = vunpack.c.l.b16 %v175
    %v253 = vunpack.c.h.b16 %v175
    %v254 = vunpack.c.l.b16 %v176
    %v255 = vunpack.c.h.b16 %v176
    %v256 = vunpack.c.l.b16 %v177
    %v257 = vunpack.c.h.b16 %v177
    %v258 = vunpack.c.l.b16 %v178
    %v259 = vunpack.c.h.b16 %v178
    %v260 = vunpack.c.l.b16 %v179
    %v261 = vunpack.c.h.b16 %v179
    %v262 = vunpack.c.l.b16 %v180
    %v263 = vunpack.c.h.b16 %v180
    %v264 = vunpack.c.l.b16 %v181
    %v265 = vunpack.c.h.b16 %v181
    %v266 = vunpack.c.l.b16 %v182
    %v267 = vunpack.c.h.b16 %v182
    %v268 = vunpack.c.l.b16 %v183
    %v269 = vunpack.c.h.b16 %v183
    %v270 = vunpack.c.l.b16 %v184
    %v271 = vunpack.c.h.b16 %v184
    %v272 = vunpack.c.l.b16 %v185
    %v273 = vunpack.c.h.b16 %v185
    %v274 = vunpack.c.l.b16 %v186
    %v275 = vunpack.c.h.b16 %v186
    %v276 = vunpack.c.l.b16 %v187
    %v277 = vunpack.c.h.b16 %v187
    %v278 = vunpack.c.l.b16 %v188
    %v279 = vunpack.c.h.b16 %v188
    %v280 = vunpack.c.l.b16 %v189
    %v281 = vunpack.c.h.b16 %v189
    %v282 = vunpack.c.l.b16 %v190
    %v283 = vunpack.c.h.b16 %v190
    %v284 = vunpack.c.l.b16 %v191
    %v285 = vunpack.c.h.b16 %v191
    %v286 = vunpack.c.l.b16 %v192
    %v287 = vunpack.c.h.b16 %v192
    %v288 = vunpack.c.l.b16 %v193
    %v289 = vunpack.c.h.b16 %v193
    %v290 = vunpack.c.l.b16 %v194
    %v291 = vunpack.c.h.b16 %v194
    %v292 = vunpack.c.l.b16 %v195
    %v293 = vunpack.c.h.b16 %v195
    %v294 = vunpack.c.l.b16 %v196
    %v295 = vunpack.c.h.b16 %v196
    %v296 = vunpack.c.l.b16 %v197
    %v297 = vunpack.c.h.b16 %v197
    %v298 = vunpack.c.l.b16 %v198
    %v299 = vunpack.c.h.b16 %v198
    %v300 = vunpack.c.l.b16 %v199
    %v301 = vunpack.c.h.b16 %v199
    %v302 = vunpack.c.l.b16 %v200
    %v303 = vunpack.c.h.b16 %v200
    %v304 = vunpack.c.l.b16 %v201
    %v305 = vunpack.c.h.b16 %v201
    %v306 = vunpack.c.l.b16 %v202
    %v307 = vunpack.c.h.b16 %v202
    %v308 = vunpack.c.l.b16 %v203
    %v309 = vunpack.c.h.b16 %v203
    %v310 = vunpack.c.l.b16 %v204
    %v311 = vunpack.c.h.b16 %v204
    %v312 = vunpack.c.l.b16 %v205
    %v313 = vunpack.c.h.b16 %v205
    %v314 = vpack.c.b16 %v252, %v250
    %v315 = vpack.c.b16 %v253, %v251
    %v316 = vpack.c.b16 %v256, %v254
    %v317 = vpack.c.b16 %v257, %v255
    %v318 = vpack.c.b16 %v260, %v258
    %v319 = vpack.c.b16 %v261, %v259
    %v320 = vpack.c.b16 %v264, %v262
    %v321 = vpack.c.b16 %v265, %v263
    %v322 = vpack.c.b16 %v268, %v266
    %v323 = vpack.c.b16 %v269, %v267
    %v324 = vpack.c.b16 %v272, %v270
    %v325 = vpack.c.b16 %v273, %v271
    %v326 = vpack.c.b16 %v276, %v274
    %v327 = vpack.c.b16 %v277, %v275
    %v328 = vpack.c.b16 %v280, %v278
    %v329 = vpack.c.b16 %v281, %v279
    %v330 = vpack.c.b16 %v284, %v282
    %v331 = vpack.c.b16 %v285, %v283
    %v332 = vpack.c.b16 %v288, %v286
    %v333 = vpack.c.b16 %v289, %v287
    %v334 = vpack.c.b16 %v292, %v290
    %v335 = vpack.c.b16 %v293, %v291
    %v336 = vpack.c.b16 %v296, %v294
    %v337 = vpack.c.b16 %v297, %v295
    %v338 = vpack.c.b16 %v300, %v298
    %v339 = vpack.c.b16 %v301, %v299
    %v340 = vpack.c.b16 %v304, %v302
    %v341 = vpack.c.b16 %v305, %v303
    %v342 = vpack.c.b16 %v308, %v306
    %v343 = vpack.c.b16 %v309, %v307
    %v344 = vpack.c.b16 %v312, %v310
    %v345 = vpack.c.b16 %v313, %v311
    %378 = vmatprep.subr.bf16.mxu0 %v315
    %379 = vmatpush1.bf16.msra.mxu0 %v314
    %380 = vmatprep.subr.bf16.mxu0 %v317
    %381 = vmatpush1.bf16.msra.mxu0 %v316
    %382 = vmatprep.subr.bf16.mxu0 %v319
    %383 = vmatpush1.bf16.msra.mxu0 %v318
    %384 = vmatprep.subr.bf16.mxu0 %v321
    %385 = vmatpush1.bf16.msra.mxu0 %v320
    %386 = vmatprep.subr.bf16.mxu0 %v323
    %387 = vmatpush1.bf16.msra.mxu0 %v322
    %388 = vmatprep.subr.bf16.mxu0 %v325
    %389 = vmatpush1.bf16.msra.mxu0 %v324
    %390 = vmatprep.subr.bf16.mxu0 %v327
    %391 = vmatpush1.bf16.msra.mxu0 %v326
    %392 = vmatprep.subr.bf16.mxu0 %v329
    %393 = vmatpush1.bf16.msra.mxu0 %v328
    %394 = vmatprep.subr.bf16.mxu0 %v331
    %395 = vmatpush1.bf16.msra.mxu0 %v330
    %396 = vmatprep.subr.bf16.mxu0 %v333
    %397 = vmatpush1.bf16.msra.mxu0 %v332
    %398 = vmatprep.subr.bf16.mxu0 %v335
    %399 = vmatpush1.bf16.msra.mxu0 %v334
    %400 = vmatprep.subr.bf16.mxu0 %v337
    %401 = vmatpush1.bf16.msra.mxu0 %v336
    %402 = vmatprep.subr.bf16.mxu0 %v339
    %403 = vmatpush1.bf16.msra.mxu0 %v338
    %404 = vmatprep.subr.bf16.mxu0 %v341
    %405 = vmatpush1.bf16.msra.mxu0 %v340
    %406 = vmatprep.subr.bf16.mxu0 %v343
    %407 = vmatpush1.bf16.msra.mxu0 %v342
    %408 = vmatprep.subr.bf16.mxu0 %v345
    %409 = vmatpush1.bf16.msra.mxu0 %v344
    %410 = vmatprep.mubr.bf16.mxu0 %v173
    %411 = vmatmul.mubr.bf16.gmra.mrb[0].mxu0 %v172
    %v412 = vpop.f32.mrb[0].mxu0
    %v413 = vadd.f32 %v211, %v412
    %v414 = vpop.f32.mrb[0].mxu0
    %v415 = vadd.f32 %v215, %v414
    %v416 = vpop.f32.mrb[0].mxu0
    %v417 = vpop.f32.mrb[0].mxu0
    %418 = vdwg.mxu0
    %v419 = vmul.f32 %v413, 0.5
    %v420 = vmul.f32 %v415, 0.5
    %v421 = vtanh.pop %v419
    %v422 = vtanh.pop %v420
    %v423 = vmul.f32 %v421, 0.5
    %v424 = vmul.f32 %v422, 0.5
    %v425 = vadd.f32 %v423, 0.5
    %v426 = vadd.f32 %v424, 0.5
    %v427 = vpack.c.bf16 %v425, %v425
    %v428 = vpack.c.bf16 %v426, %v426
    %v429 = vld [vmem:[#allocation8] sm:$0xf]
    %v430 = vld [vmem:[#allocation8 + $0x4] sm:$0xf]
    %v431 = vld [vmem:[#allocation8 + $0x8] sm:$0xf]
    %v432 = vld [vmem:[#allocation8 + $0xc] sm:$0xf]
    %v433 = vld [vmem:[#allocation8 + $0x10] sm:$0xf]
    %v434 = vld [vmem:[#allocation8 + $0x14] sm:$0xf]
    %v435 = vld [vmem:[#allocation8 + $0x18] sm:$0xf]
    %v436 = vld [vmem:[#allocation8 + $0x1c] sm:$0xf]
    %v437 = vld [vmem:[#allocation8 + $0x20] sm:$0xf]
    %v438 = vld [vmem:[#allocation8 + $0x24] sm:$0xf]
    %v439 = vld [vmem:[#allocation8 + $0x28] sm:$0xf]
    %v440 = vld [vmem:[#allocation8 + $0x2c] sm:$0xf]
    %v441 = vld [vmem:[#allocation8 + $0x30] sm:$0xf]
    %v442 = vld [vmem:[#allocation8 + $0x34] sm:$0xf]
    %v443 = vld [vmem:[#allocation8 + $0x38] sm:$0xf]
    %v444 = vld [vmem:[#allocation8 + $0x3c] sm:$0xf]
    %v445 = vld [vmem:[#allocation8 + $0x40] sm:$0xf]
    %v446 = vld [vmem:[#allocation8 + $0x44] sm:$0xf]
    %v447 = vld [vmem:[#allocation8 + $0x48] sm:$0xf]
    %v448 = vld [vmem:[#allocation8 + $0x4c] sm:$0xf]
    %v449 = vld [vmem:[#allocation8 + $0x50] sm:$0xf]
    %v450 = vld [vmem:[#allocation8 + $0x54] sm:$0xf]
    %v451 = vld [vmem:[#allocation8 + $0x58] sm:$0xf]
    %v452 = vld [vmem:[#allocation8 + $0x5c] sm:$0xf]
    %v453 = vld [vmem:[#allocation8 + $0x60] sm:$0xf]
    %v454 = vld [vmem:[#allocation8 + $0x64] sm:$0xf]
    %v455 = vld [vmem:[#allocation8 + $0x68] sm:$0xf]
    %v456 = vld [vmem:[#allocation8 + $0x6c] sm:$0xf]
    %v457 = vld [vmem:[#allocation8 + $0x70] sm:$0xf]
    %v458 = vld [vmem:[#allocation8 + $0x74] sm:$0xf]
    %v459 = vld [vmem:[#allocation8 + $0x78] sm:$0xf]
    %v460 = vld [vmem:[#allocation8 + $0x7c] sm:$0xf]
    %v461 = vld [vmem:[%s6] sm:$0x1]
    %v463 = vlaneseq
    %v464 = vshrl.u32 %v463, 7
    %v465 = vsub.s32 0, %v464
    %v466 = vrot.slane %v461, %v465
    %v500 = vunpack.c.l.b16 %v429
    %v501 = vunpack.c.l.b16 %v430
    %v502 = vunpack.c.l.b16 %v431
    %v503 = vunpack.c.l.b16 %v432
    %v504 = vunpack.c.l.b16 %v433
    %v505 = vunpack.c.l.b16 %v434
    %v506 = vunpack.c.l.b16 %v435
    %v507 = vunpack.c.l.b16 %v436
    %v508 = vunpack.c.l.b16 %v437
    %v509 = vunpack.c.l.b16 %v438
    %v510 = vunpack.c.l.b16 %v439
    %v511 = vunpack.c.l.b16 %v440
    %v512 = vunpack.c.l.b16 %v441
    %v513 = vunpack.c.l.b16 %v442
    %v514 = vunpack.c.l.b16 %v443
    %v515 = vunpack.c.l.b16 %v444
    %v516 = vunpack.c.l.b16 %v445
    %v517 = vunpack.c.l.b16 %v446
    %v518 = vunpack.c.l.b16 %v447
    %v519 = vunpack.c.l.b16 %v448
    %v520 = vunpack.c.l.b16 %v449
    %v521 = vunpack.c.l.b16 %v450
    %v522 = vunpack.c.l.b16 %v451
    %v523 = vunpack.c.l.b16 %v452
    %v524 = vunpack.c.l.b16 %v453
    %v525 = vunpack.c.l.b16 %v454
    %v526 = vunpack.c.l.b16 %v455
    %v527 = vunpack.c.l.b16 %v456
    %v528 = vunpack.c.l.b16 %v457
    %v529 = vunpack.c.l.b16 %v458
    %v530 = vunpack.c.l.b16 %v459
    %v531 = vunpack.c.l.b16 %v460
    %v532 = vpack.c.b16 %v501, %v500
    %v533 = vpack.c.b16 %v503, %v502
    %v534 = vpack.c.b16 %v505, %v504
    %v535 = vpack.c.b16 %v507, %v506
    %v536 = vpack.c.b16 %v509, %v508
    %v537 = vpack.c.b16 %v511, %v510
    %v538 = vpack.c.b16 %v513, %v512
    %v539 = vpack.c.b16 %v515, %v514
    %v540 = vpack.c.b16 %v517, %v516
    %v541 = vpack.c.b16 %v519, %v518
    %v542 = vpack.c.b16 %v521, %v520
    %v543 = vpack.c.b16 %v523, %v522
    %v544 = vpack.c.b16 %v525, %v524
    %v545 = vpack.c.b16 %v527, %v526
    %v546 = vpack.c.b16 %v529, %v528
    %v547 = vpack.c.b16 %v531, %v530
    %564 = vmatprep.subr.bf16.mxu0 0
    %565 = vmatpush1.bf16.msra.mxu0 %v532
    %566 = vmatprep.subr.bf16.mxu0 0
    %567 = vmatpush1.bf16.msra.mxu0 %v533
    %568 = vmatprep.subr.bf16.mxu0 0
    %569 = vmatpush1.bf16.msra.mxu0 %v534
    %570 = vmatprep.subr.bf16.mxu0 0
    %571 = vmatpush1.bf16.msra.mxu0 %v535
    %572 = vmatprep.subr.bf16.mxu0 0
    %573 = vmatpush1.bf16.msra.mxu0 %v536
    %574 = vmatprep.subr.bf16.mxu0 0
    %575 = vmatpush1.bf16.msra.mxu0 %v537
    %576 = vmatprep.subr.bf16.mxu0 0
    %577 = vmatpush1.bf16.msra.mxu0 %v538
    %578 = vmatprep.subr.bf16.mxu0 0
    %579 = vmatpush1.bf16.msra.mxu0 %v539
    %580 = vmatprep.subr.bf16.mxu0 0
    %581 = vmatpush1.bf16.msra.mxu0 %v540
    %582 = vmatprep.subr.bf16.mxu0 0
    %583 = vmatpush1.bf16.msra.mxu0 %v541
    %584 = vmatprep.subr.bf16.mxu0 0
    %585 = vmatpush1.bf16.msra.mxu0 %v542
    %586 = vmatprep.subr.bf16.mxu0 0
    %587 = vmatpush1.bf16.msra.mxu0 %v543
    %588 = vmatprep.subr.bf16.mxu0 0
    %589 = vmatpush1.bf16.msra.mxu0 %v544
    %590 = vmatprep.subr.bf16.mxu0 0
    %591 = vmatpush1.bf16.msra.mxu0 %v545
    %592 = vmatprep.subr.bf16.mxu0 0
    %593 = vmatpush1.bf16.msra.mxu0 %v546
    %594 = vmatprep.subr.bf16.mxu0 0
    %595 = vmatpush1.bf16.msra.mxu0 %v547
    %596 = vmatprep.mubr.bf16.mxu0 %v428
    %597 = vmatmul.mubr.bf16.gmra.mrb[0].mxu0 %v427
    %v598 = vpop.f32.mrb[0].mxu0
    %v599 = vadd.f32 %v466, %v598
    %v600 = vpop.f32.mrb[0].mxu0
    %v601 = vpop.f32.mrb[0].mxu0
    %v602 = vpop.f32.mrb[0].mxu0
    %603 = vdwg.mxu0
    %v604 = vmul.f32 %v599, 0.5
    %v605 = vtanh.pop %v604
    %v606 = vmul.f32 %v605, 0.5
    %v607 = vadd.f32 %v606, 0.5
    %v608 = vmul.f32 %v607, 12.0
    %609 = vst [vmem:[#allocation10] sm:$0xff] %v608
    // Predicated region
    $region46: #{tpu_custom_call.1} parent=1 // pred_check
      _
    $region47: #{tpu_custom_call.1} parent=1 // pred_check_branch
      %611 = sbr.rel (0) target = $region49
    $region48: #{tpu_custom_call.1} parent=1 // pred_region
      %s613 = ssub.s32 128, 128
      %614 = vsyncadd [#allocation4], %s613
      %s616 = sshll.u32 [#allocation10], 4
      %s617 = int_to_ptr.vmem [resolvable:$true] %s616
      %619 = dma.vmem_to_hbm [thread:$0]  %s617, 128, %s7, [#allocation4]
    $region49: #{tpu_custom_call.1} parent=1 // pred_fallthru
      _
    // Predicated region
    $region50: #{tpu_custom_call.1} parent=1 // pred_check
      _
    $region51: #{tpu_custom_call.1} parent=1 // pred_check_branch
      %621 = sbr.rel (0) target = $region53
    $region52: #{tpu_custom_call.1} parent=1 // pred_region
      %622 = dma.done [#allocation4], 128
    $region53: #{tpu_custom_call.1} parent=1 // pred_fallthru
      _
    %623 = vsyncpa [#allocation3], 1
    %624 = vsyncpa [#allocation6], 1
    %625 = vsyncpa [#allocation9], 1
    %626 = vsyncpa [#allocation4], 1

</llo_original>
